<compile_context>
chip_gen: v7x
topology: tpu7x:2x2x1
jax: 0.10.0
libtpu: 0.0.40
codegen_flags: <defaults>
</compile_context>

<pallas_src>
from math import pi, sqrt
from functools import reduce
from operator import mul

import jax
import jax.numpy as jnp
from jax.experimental import pallas as pl
from jax.experimental.pallas import tpu as pltpu


# ----------------------------------------------------------------------------
# Spherical-harmonics precompute (pure JAX glue; mirrors the torch reference).
# TODO(synk): this recursive Legendre construction is one-time cached setup and
# is intentionally left outside the Pallas kernel.
# ----------------------------------------------------------------------------
def _pochhammer(x, k):
    return reduce(mul, range(x + 1, x + k), float(x))


def _semifactorial(x):
    return reduce(mul, range(x, 1, -2), 1.0)


def _lpmv(l, m, x, cache):
    """Associated Legendre function incl. Condon-Shortley phase (m >= 0 here)."""
    key = (l, m)
    if key in cache:
        return cache[key]
    m_abs = abs(m)
    if m_abs > l:
        return None
    if l == 0:
        y = jnp.ones_like(x)
        cache[key] = y
        return y
    if m_abs == l:
        y = (-1.0) ** m_abs * _semifactorial(2 * m_abs - 1)
        y = y * jnp.power(1.0 - x * x, m_abs / 2.0)
        cache[key] = y
        return y
    _lpmv(l - 1, m, x, cache)  # populate cache (same as reference)
    y = (2 * l - 1) / (l - m_abs) * x * _lpmv(l - 1, m_abs, x, cache)
    if l - m_abs > 1:
        y = y - (l + m_abs - 1) / (l - m_abs) * cache[(l - 2, m_abs)]
    cache[key] = y
    return y


def _sph_element(l, m, theta, phi, cache):
    m_abs = abs(m)
    N = sqrt((2 * l + 1) / (4 * pi))
    leg = _lpmv(l, m_abs, jnp.cos(theta), cache)
    if m == 0:
        return N * jnp.broadcast_to(leg[:, None], (theta.shape[0], phi.shape[0]))
    if m > 0:
        Y = jnp.cos(m * phi)
    else:
        Y = jnp.sin(m_abs * phi)
    Y = Y[None, :] * leg[:, None]
    N = N * sqrt(2.0 / _pochhammer(l - m_abs + 1, 2 * m_abs))
    return N * Y


def get_spherical_harmonics(l, theta, phi, cache):
    return jnp.stack(
        [_sph_element(l, m, theta, phi, cache) for m in range(-l, l + 1)], axis=-1
    )


def build_sph_harmonics(l_max, lat, lon):
    cache = {}
    Y = [get_spherical_harmonics(l, lat, lon, cache) for l in range(l_max + 1)]
    return jnp.concatenate(Y, axis=-1)  # [nlat, nlon, (l_max+1)^2]


# ----------------------------------------------------------------------------
# GELU variants
# ----------------------------------------------------------------------------
def _gelu_exact(x):
    # torch.nn.GELU default (erf-based, exact), f32
    return 0.5 * x * (1.0 + jax.lax.erf(x * (1.0 / sqrt(2.0))))


_GELU_TANH_C = sqrt(2.0 / pi)


def _gelu_tanh(x):
    # tanh approximation: routes the transcendental to the EUP slot instead of
    # a ~15-20-op erf polynomial on the VALU.  ~1e-3 abs deviation from exact.
    return 0.5 * x * (1.0 + jnp.tanh(_GELU_TANH_C * (x + 0.044715 * (x * x * x))))


# ----------------------------------------------------------------------------
# Pallas kernel: fused  S @ Wb -> GELU -> @ W1 + b1 -> GELU -> @ W2 + b2
# Serves both the lane-packed (block-diagonal weights) and plain layouts --
# the math is identical, only the array shapes differ.
# ----------------------------------------------------------------------------
def _make_pe_kernel(gelu_approx):
    act = _gelu_tanh if gelu_approx else _gelu_exact

    def kernel(s_ref, wb_ref, w1_ref, b1_ref, w2_ref, b2_ref, o_ref):
        # S @ Wb  (f32 accumulation on the MXU)
        h = jnp.dot(s_ref[...], wb_ref[...], preferred_element_type=jnp.float32)
        h = act(h)
        # GELU(.) @ W1 + b1
        h = jnp.dot(h.astype(w1_ref.dtype), w1_ref[...],
                    preferred_element_type=jnp.float32)
        h = act(h + b1_ref[...])
        # GELU(.) @ W2 + b2
        h = jnp.dot(h.astype(w2_ref.dtype), w2_ref[...],
                    preferred_element_type=jnp.float32)
        o_ref[...] = (h + b2_ref[...]).astype(o_ref.dtype)

    return kernel


_PACK = 8                       # rows folded into the lane axis (sublane count)
_SINGLE_BLOCK_MAX_FLAT_ROWS = 65536
_DEFAULT_TILE_FLAT_ROWS = 32768  # ~3 MB/step bf16; 32 even steps for 721x1440


# ----------------------------------------------------------------------------
# One-time packing (corresponds to the torch module's cached buffer).
# ----------------------------------------------------------------------------
def pack_pe_state(sph, basis_weight, w1, b1, w2, b2, *,
                  param_dtype=jnp.bfloat16, lane_pack=True):
    """Pack the cached basis + MLP weights for the fused kernel.  Do this ONCE.

    sph: [nlat, nlon, Db]; weights in (in, out) layout; biases 1-D.
    """
    nlat, nlon, Db = sph.shape
    dim = basis_weight.shape[1]
    out_dim = w2.shape[1]
    M = nlat * nlon

    # Lane-dense packing: fold p=8 consecutive flat rows into the lane axis so
    # DMAs, GELU and stores run on full 128-lane vregs and the MXU sees
    # K=8*Db / N=8*dim.  Weights become 8x block-diagonal (exact math).
    itemsize = jnp.dtype(param_dtype).itemsize
    bd_bytes = _PACK * _PACK * (Db * dim + dim * dim + dim * out_dim) * itemsize
    p = _PACK if (lane_pack and M % _PACK == 0 and bd_bytes <= 8 * 1024 * 1024) else 1

    s_in = sph.reshape(M, Db).astype(param_dtype)
    if p > 1:
        s_in = s_in.reshape(M // p, p * Db)           # pure reshape, no pad/copy
        eye = jnp.eye(p, dtype=param_dtype)
        wb_in = jnp.kron(eye, basis_weight.astype(param_dtype))   # (p*Db, p*dim)
        w1_in = jnp.kron(eye, w1.astype(param_dtype))             # (p*dim, p*dim)
        w2_in = jnp.kron(eye, w2.astype(param_dtype))             # (p*dim, p*out)
        b1_in = jnp.tile(b1.astype(jnp.float32), p).reshape(1, p * dim)
        b2_in = jnp.tile(b2.astype(jnp.float32), p).reshape(1, p * out_dim)
    else:
        wb_in = basis_weight.astype(param_dtype)
        w1_in = w1.astype(param_dtype)
        w2_in = w2.astype(param_dtype)
        b1_in = b1.astype(jnp.float32).reshape(1, dim)
        b2_in = b2.astype(jnp.float32).reshape(1, out_dim)

    return dict(s=s_in, wb=wb_in, w1=w1_in, b1=b1_in, w2=w2_in, b2=b2_in,
                nlat=nlat, nlon=nlon, M=M, p=p, Db=Db, dim=dim, out_dim=out_dim,
                param_dtype=param_dtype)


# ----------------------------------------------------------------------------
# Per-call forward: exactly one pallas_call, no extra XLA passes.
# ----------------------------------------------------------------------------
def pe_forward(state, *, tm=None, out_dtype=None, gelu_approx=True):
    """Fused forward on a packed state.

    tm:          row tile in FLAT grid rows (default: single slab for small
                 grids, 32K rows for big ones).
    out_dtype:   output dtype (default: storage dtype, i.e. bf16 -> halves the
                 HBM write; pass jnp.float32 for bit-faithful output).
    gelu_approx: True  -> tanh GELU on the EUP (perf default; ~1e-3 deviation).
                 False -> exact erf GELU (torch default semantics).
    """
    p, M = state["p"], state["M"]
    nlat, nlon = state["nlat"], state["nlon"]
    Db, dim, out_dim = state["Db"], state["dim"], state["out_dim"]
    rows = M // p                                   # packed rows in the slab
    if out_dtype is None:
        out_dtype = state["param_dtype"]
    if tm is None:
        tm = M if M <= _SINGLE_BLOCK_MAX_FLAT_ROWS else _DEFAULT_TILE_FLAT_ROWS

    tile_rows = max(tm // p, 1)
    if tile_rows >= rows:
        tile_rows = rows                            # single block == full array
        grid = (1,)
    else:
        tile_rows = max((tile_rows // 8) * 8, 8)    # sublane-aligned tiles
        # Partial last block handled by the uneven grid (no data padding, so no
        # post-kernel slice copy).  For v7x, an even step count keeps both TCs
        # busy; 721x1440 with the default tile gives 32 steps.
        grid = (pl.cdiv(rows, tile_rows),)

    kernel = _make_pe_kernel(gelu_approx)

    # Weight/bias blocks use a constant index_map -> fetched once and kept
    # resident in VMEM across the (parallel) row grid; they are KB-scale.
    out_packed = pl.pallas_call(
        kernel,
        out_shape=jax.ShapeDtypeStruct((rows, p * out_dim), out_dtype),
        grid_spec=pltpu.PrefetchScalarGridSpec(
            num_scalar_prefetch=0,
            grid=grid,
            in_specs=[
                pl.BlockSpec((tile_rows, p * Db), lambda i: (i, 0)),
                pl.BlockSpec((p * Db, p * dim), lambda i: (0, 0)),
                pl.BlockSpec((p * dim, p * dim), lambda i: (0, 0)),
                pl.BlockSpec((1, p * dim), lambda i: (0, 0)),
                pl.BlockSpec((p * dim, p * out_dim), lambda i: (0, 0)),
                pl.BlockSpec((1, p * out_dim), lambda i: (0, 0)),
            ],
            out_specs=pl.BlockSpec((tile_rows, p * out_dim), lambda i: (i, 0)),
        ),
        compiler_params=pltpu.CompilerParams(
            dimension_semantics=("parallel",),
            # > v5e's 16 MiB default scoped VMEM, < v7x's 64 MiB physical.
            vmem_limit_bytes=48 * 1024 * 1024,
        ),
    )(state["s"], state["wb"], state["w1"], state["b1"], state["w2"], state["b2"])

    # (rows, p*out_dim) -> (M, out_dim) -> (nlat, nlon, out_dim): free reshapes.
    return out_packed.reshape(nlat, nlon, out_dim)


def spherical_harmonics_pe(sph, basis_weight, w1, b1, w2, b2, *,
                           tm=None, param_dtype=jnp.bfloat16, out_dtype=None,
                           gelu_approx=True, lane_pack=True):
    """Convenience wrapper (packing + forward).  In production, call
    pack_pe_state() once next to the cached basis and reuse pe_forward()."""
    state = pack_pe_state(sph, basis_weight, w1, b1, w2, b2,
                          param_dtype=param_dtype, lane_pack=lane_pack)
    return pe_forward(state, tm=tm, out_dtype=out_dtype, gelu_approx=gelu_approx)


# ----------------------------------------------------------------------------
# Pure-JAX reference for verification (exact erf GELU, f32 -- torch semantics)
# ----------------------------------------------------------------------------
def reference_forward(sph, basis_weight, w1, b1, w2, b2):
    h = jnp.einsum("ijd,dc->ijc", sph, basis_weight)
    h = _gelu_exact(h)
    h = h @ w1 + b1
    h = _gelu_exact(h)
    h = h @ w2 + b2
    return h


if __name__ == "__main__":
    # Module config (matches SphericalHarmonicsPE(l_max, dim, out_dim, use_mlp=True))
    l_max, dim, out_dim = 3, 32, 16
    nlat, nlon = 8, 16
    Db = (l_max + 1) ** 2  # 16

    key = jax.random.PRNGKey(0)
    k_lat, k_lon, k_bw, k_w1, k_b1, k_w2, k_b2 = jax.random.split(key, 7)

    # lat = collatitude/polar angle in (0, pi), lon = azimuth in [0, 2*pi)
    lat = jax.random.uniform(k_lat, (nlat,), jnp.float32, 0.05, pi - 0.05)
    lon = jax.random.uniform(k_lon, (nlon,), jnp.float32, 0.0, 2.0 * pi)

    # Deterministic parameter init (shapes per __init__; torch Linear is
    # y = x W^T + b, so weights are kept in (in, out) layout for the kernel).
    basis_weight = jax.random.normal(k_bw, (Db, dim), jnp.float32) / (l_max + 1)
    bound1 = 1.0 / sqrt(dim)
    w1 = jax.random.uniform(k_w1, (dim, dim), jnp.float32, -bound1, bound1)
    b1 = jax.random.uniform(k_b1, (dim,), jnp.float32, -bound1, bound1)
    w2 = jax.random.uniform(k_w2, (dim, out_dim), jnp.float32, -bound1, bound1)
    b2 = jax.random.uniform(k_b2, (out_dim,), jnp.float32, -bound1, bound1)

    # One-time spherical-harmonics basis (the "cached buffer" in the torch module).
    sph = build_sph_harmonics(l_max, lat, lon)  # [nlat, nlon, Db]
    assert sph.shape == (nlat, nlon, Db)

    ref = reference_forward(sph, basis_weight, w1, b1, w2, b2)

    # 1) f32 lane-packed, exact erf GELU (torch semantics): tight check.
    #    Packing hoisted: pack once, forward reuses the packed state.
    st_f32 = pack_pe_state(sph, basis_weight, w1, b1, w2, b2,
                           param_dtype=jnp.float32)
    out_f32 = jax.block_until_ready(
        pe_forward(st_f32, out_dtype=jnp.float32, gelu_approx=False))
    assert out_f32.shape == (nlat, nlon, out_dim)
    assert jnp.allclose(out_f32, ref, atol=1e-4, rtol=1e-4), (
        f"f32 packed exact: max abs err = {jnp.max(jnp.abs(out_f32 - ref))}"
    )

    # 2) Perf-default path: bf16 storage + bf16 output + tanh GELU (EUP).
    #    Precision tradeoff per review -- looser check.
    out_perf = spherical_harmonics_pe(sph, basis_weight, w1, b1, w2, b2)
    out_perf = jax.block_until_ready(out_perf).astype(jnp.float32)
    assert jnp.allclose(out_perf, ref, atol=5e-2, rtol=5e-2), (
        f"bf16 perf path: max abs err = {jnp.max(jnp.abs(out_perf - ref))}"
    )

    # 3) Multi-step grid path (tiny tile forces grid > 1, even blocks): tight.
    out_grid = spherical_harmonics_pe(
        sph, basis_weight, w1, b1, w2, b2, tm=64,
        param_dtype=jnp.float32, out_dtype=jnp.float32, gelu_approx=False)
    out_grid = jax.block_until_ready(out_grid)
    assert jnp.allclose(out_grid, ref, atol=1e-4, rtol=1e-4), (
        f"f32 multi-step: max abs err = {jnp.max(jnp.abs(out_grid - ref))}"
    )

    # 4) Uneven grid (partial last block, like a 721-row grid): tight.
    lat9 = jax.random.uniform(jax.random.PRNGKey(1), (9,), jnp.float32,
                              0.05, pi - 0.05)
    sph9 = build_sph_harmonics(l_max, lat9, lon)          # [9, 16, Db] -> 18 packed rows
    ref9 = reference_forward(sph9, basis_weight, w1, b1, w2, b2)
    out9 = spherical_harmonics_pe(
        sph9, basis_weight, w1, b1, w2, b2, tm=64,         # 8-row tiles, grid=3 (uneven)
        param_dtype=jnp.float32, out_dtype=jnp.float32, gelu_approx=False)
    out9 = jax.block_until_ready(out9)
    assert jnp.allclose(out9, ref9, atol=1e-4, rtol=1e-4), (
        f"f32 uneven grid: max abs err = {jnp.max(jnp.abs(out9 - ref9))}"
    )

    # 5) Unpacked fallback (used automatically if dim were large or M % 8 != 0).
    out_plain = spherical_harmonics_pe(
        sph, basis_weight, w1, b1, w2, b2, param_dtype=jnp.float32,
        out_dtype=jnp.float32, gelu_approx=False, lane_pack=False)
    out_plain = jax.block_until_ready(out_plain)
    assert jnp.allclose(out_plain, ref, atol=1e-4, rtol=1e-4), (
        f"f32 plain: max abs err = {jnp.max(jnp.abs(out_plain - ref))}"
    )

    print("KERNEL_OK")
</pallas_src>

<mosaic_0001>
module attributes {stable_mosaic.version = 11 : i64} {
  func.func @kernel(%arg0: i32, %arg1: memref<16x128xf32, #tpu.memory_space<vmem>>, %arg2: memref<128x256xf32, #tpu.memory_space<vmem>>, %arg3: memref<256x256xf32, #tpu.memory_space<vmem>>, %arg4: memref<1x256xf32, #tpu.memory_space<vmem>>, %arg5: memref<256x128xf32, #tpu.memory_space<vmem>>, %arg6: memref<1x128xf32, #tpu.memory_space<vmem>>, %arg7: memref<16x128xf32, #tpu.memory_space<vmem>>) attributes {dimension_semantics = [#tpu.dimension_semantics<parallel>], iteration_bounds = array<i64: 1>, scalar_prefetch = 0 : i64, scratch_operands = 0 : i64, tpu.core_type = #tpu.core_type<tc>, window_params = [{transform_indices = @transform_0, window_bounds = array<i64: 16, 128>}, {pipeline_mode = #tpu.pipeline_mode<synchronous>, transform_indices = @transform_1, window_bounds = array<i64: 128, 256>}, {pipeline_mode = #tpu.pipeline_mode<synchronous>, transform_indices = @transform_2, window_bounds = array<i64: 256, 256>}, {pipeline_mode = #tpu.pipeline_mode<synchronous>, transform_indices = @transform_3, window_bounds = array<i64: 1, 256>}, {pipeline_mode = #tpu.pipeline_mode<synchronous>, transform_indices = @transform_4, window_bounds = array<i64: 256, 128>}, {pipeline_mode = #tpu.pipeline_mode<synchronous>, transform_indices = @transform_5, window_bounds = array<i64: 1, 128>}, {transform_indices = @transform_6, window_bounds = array<i64: 16, 128>}]} {
    %c0 = arith.constant 0 : index
    %c0_0 = arith.constant 0 : index
    %0 = vector.load %arg1[%c0, %c0_0] : memref<16x128xf32, #tpu.memory_space<vmem>>, vector<16x128xf32>
    %c0_1 = arith.constant 0 : index
    %c0_2 = arith.constant 0 : index
    %1 = vector.load %arg2[%c0_1, %c0_2] : memref<128x256xf32, #tpu.memory_space<vmem>>, vector<128x256xf32>
    %cst = arith.constant dense<0.000000e+00> : vector<16x256xf32>
    %2 = tpu.matmul %0, %1, %cst {dimension_numbers = #tpu.dot_dimension_numbers<[1], [0], [0], [1], [0, 0, 1, 1], [], []>} : vector<16x128xf32>, vector<128x256xf32>, vector<16x256xf32> -> vector<16x256xf32>
    %cst_3 = arith.constant 5.000000e-01 : f32
    %3 = vector.broadcast %cst_3 : f32 to vector<16x256xf32>
    %4 = arith.mulf %3, %2 : vector<16x256xf32>
    %cst_4 = arith.constant 0.707106769 : f32
    %5 = vector.broadcast %cst_4 : f32 to vector<16x256xf32>
    %6 = arith.mulf %2, %5 : vector<16x256xf32>
    %7 = math.erf %6 : vector<16x256xf32>
    %cst_5 = arith.constant 1.000000e+00 : f32
    %8 = vector.broadcast %cst_5 : f32 to vector<16x256xf32>
    %9 = arith.addf %8, %7 : vector<16x256xf32>
    %10 = arith.mulf %4, %9 : vector<16x256xf32>
    %c0_6 = arith.constant 0 : index
    %c0_7 = arith.constant 0 : index
    %11 = vector.load %arg3[%c0_6, %c0_7] : memref<256x256xf32, #tpu.memory_space<vmem>>, vector<256x256xf32>
    %cst_8 = arith.constant dense<0.000000e+00> : vector<16x256xf32>
    %12 = tpu.matmul %10, %11, %cst_8 {dimension_numbers = #tpu.dot_dimension_numbers<[1], [0], [0], [1], [0, 0, 1, 1], [], []>} : vector<16x256xf32>, vector<256x256xf32>, vector<16x256xf32> -> vector<16x256xf32>
    %c0_9 = arith.constant 0 : index
    %c0_10 = arith.constant 0 : index
    %13 = vector.load %arg4[%c0_9, %c0_10] : memref<1x256xf32, #tpu.memory_space<vmem>>, vector<1x256xf32>
    %14 = vector.broadcast %13 : vector<1x256xf32> to vector<16x256xf32>
    %15 = arith.addf %12, %14 : vector<16x256xf32>
    %cst_11 = arith.constant 5.000000e-01 : f32
    %16 = vector.broadcast %cst_11 : f32 to vector<16x256xf32>
    %17 = arith.mulf %16, %15 : vector<16x256xf32>
    %cst_12 = arith.constant 0.707106769 : f32
    %18 = vector.broadcast %cst_12 : f32 to vector<16x256xf32>
    %19 = arith.mulf %15, %18 : vector<16x256xf32>
    %20 = math.erf %19 : vector<16x256xf32>
    %cst_13 = arith.constant 1.000000e+00 : f32
    %21 = vector.broadcast %cst_13 : f32 to vector<16x256xf32>
    %22 = arith.addf %21, %20 : vector<16x256xf32>
    %23 = arith.mulf %17, %22 : vector<16x256xf32>
    %c0_14 = arith.constant 0 : index
    %c0_15 = arith.constant 0 : index
    %24 = vector.load %arg5[%c0_14, %c0_15] : memref<256x128xf32, #tpu.memory_space<vmem>>, vector<256x128xf32>
    %cst_16 = arith.constant dense<0.000000e+00> : vector<16x128xf32>
    %25 = tpu.matmul %23, %24, %cst_16 {dimension_numbers = #tpu.dot_dimension_numbers<[1], [0], [0], [1], [0, 0, 1, 1], [], []>} : vector<16x256xf32>, vector<256x128xf32>, vector<16x128xf32> -> vector<16x128xf32>
    %c0_17 = arith.constant 0 : index
    %c0_18 = arith.constant 0 : index
    %26 = vector.load %arg6[%c0_17, %c0_18] : memref<1x128xf32, #tpu.memory_space<vmem>>, vector<1x128xf32>
    %27 = vector.broadcast %26 : vector<1x128xf32> to vector<16x128xf32>
    %28 = arith.addf %25, %27 : vector<16x128xf32>
    %c0_19 = arith.constant 0 : index
    %c0_20 = arith.constant 0 : index
    %29 = vector.load %arg7[%c0_19, %c0_20] : memref<16x128xf32, #tpu.memory_space<vmem>>, vector<16x128xf32>
    tpu.vector_store %arg7[%c0_19, %c0_20], %28 {strides = array<i32>} : memref<16x128xf32, #tpu.memory_space<vmem>>, vector<16x128xf32>,
    return
  }
  func.func @transform_0(%arg0: i32) -> (i32, i32) {
    %c0_i32 = arith.constant 0 : i32
    %c0_i32_0 = arith.constant 0 : i32
    return %arg0, %c0_i32 : i32, i32
  }
  func.func @transform_1(%arg0: i32) -> (i32, i32) {
    %c0_i32 = arith.constant 0 : i32
    %c0_i32_0 = arith.constant 0 : i32
    %c0_i32_1 = arith.constant 0 : i32
    return %c0_i32, %c0_i32_0 : i32, i32
  }
  func.func @transform_2(%arg0: i32) -> (i32, i32) {
    %c0_i32 = arith.constant 0 : i32
    %c0_i32_0 = arith.constant 0 : i32
    %c0_i32_1 = arith.constant 0 : i32
    return %c0_i32, %c0_i32_0 : i32, i32
  }
  func.func @transform_3(%arg0: i32) -> (i32, i32) {
    %c0_i32 = arith.constant 0 : i32
    %c0_i32_0 = arith.constant 0 : i32
    %c0_i32_1 = arith.constant 0 : i32
    return %c0_i32, %c0_i32_0 : i32, i32
  }
  func.func @transform_4(%arg0: i32) -> (i32, i32) {
    %c0_i32 = arith.constant 0 : i32
    %c0_i32_0 = arith.constant 0 : i32
    %c0_i32_1 = arith.constant 0 : i32
    return %c0_i32, %c0_i32_0 : i32, i32
  }
  func.func @transform_5(%arg0: i32) -> (i32, i32) {
    %c0_i32 = arith.constant 0 : i32
    %c0_i32_0 = arith.constant 0 : i32
    %c0_i32_1 = arith.constant 0 : i32
    return %c0_i32, %c0_i32_0 : i32, i32
  }
  func.func @transform_6(%arg0: i32) -> (i32, i32) {
    %c0_i32 = arith.constant 0 : i32
    %c0_i32_0 = arith.constant 0 : i32
    return %arg0, %c0_i32 : i32, i32
  }
}

</mosaic_0001>

<llo_original>
// kernel: tpu_custom_call.1
$region0: #{tpu_custom_call.1}
  #allocation0 [shape = 'u32[]', space=smem, size = 0x4, offset = 0x4, fixed_abs, tag = 'smem constant byte address 0x4 - core index']
  #allocation1 [shape = 'u32[144,128]{1,0:T(1,128)}', space=vmem, size = 0x12000, scoped, tag = 'internal scratch']
  %s0 = inlined_call_operand.hbm [shape: f32[16,128], index: 0, kind: input, shape index: {}]
  %s1 = inlined_call_operand.hbm [shape: f32[128,256], index: 1, kind: input, shape index: {}]
  %s2 = inlined_call_operand.hbm [shape: f32[256,256], index: 2, kind: input, shape index: {}]
  %s3 = inlined_call_operand.vmem [shape: f32[1,256], index: 3, kind: input, shape index: {}]
  %s4 = inlined_call_operand.hbm [shape: f32[256,128], index: 4, kind: input, shape index: {}]
  %s5 = inlined_call_operand.vmem [shape: f32[1,128], index: 5, kind: input, shape index: {}]
  %s6 = inlined_call_operand.hbm [shape: f32[16,128], index: 6, kind: output, shape index: {}]
  %s7 = sld [smem:[#allocation0]]
  $region50: #{tpu_custom_call.1} parent=0
    _
  %s9 = ssub.s32 1, %s7
  %s10 = scalar_select 0, %s9, %s7
  $region1: #{tpu_custom_call.1} parent=0
    #allocation2 [shape = 'u8[8192]{0}', space=vmem, size = 0x2000, scoped, tag = 'input window, operand 0, single buffered']
    #allocation3 [shape = 's32[1]{0}', space=sflag, size = 0x4, scoped, tag = 'scoped memory for tpu_custom_call.1']
    #allocation4 [shape = 's32[1]{0}', space=sflag, size = 0x4, scoped, tag = 'scoped memory for tpu_custom_call.1']
    #allocation5 [shape = 'u8[131072]{0}', space=vmem, size = 0x20000, scoped, tag = 'input window, operand 1, single buffered']
    #allocation6 [shape = 's32[1]{0}', space=sflag, size = 0x4, scoped, tag = 'scoped memory for tpu_custom_call.1']
    #allocation7 [shape = 'u8[262144]{0}', space=vmem, size = 0x40000, scoped, tag = 'input window, operand 2, single buffered']
    #allocation8 [shape = 'u8[131072]{0}', space=vmem, size = 0x20000, scoped, tag = 'input window, operand 4, single buffered']
    #allocation9 [shape = 's32[1]{0}', space=sflag, size = 0x4, scoped, tag = 'scoped memory for tpu_custom_call.1']
    #allocation10 [shape = 'u8[8192]{0}', space=vmem, size = 0x2000, scoped, tag = 'output window, operand 0, single buffered']
    %11 = vsyncpa [#allocation3], 0
    %12 = vsyncpa [#allocation6], 0
    %13 = vsyncpa [#allocation9], 0
    %14 = vsyncpa [#allocation4], 0
    // Predicated region
    $region2: #{tpu_custom_call.1} parent=1 // pred_check
      _
    $region3: #{tpu_custom_call.1} parent=1 // pred_check_branch
      %16 = sbr.rel (0) target = $region5
    $region4: #{tpu_custom_call.1} parent=1 // pred_region
      %s18 = ssub.s32 256, 256
      %19 = vsyncadd [#allocation3], %s18
      %s20 = sshll.u32 [#allocation2], 4
      %s21 = int_to_ptr.vmem [resolvable:$true] %s20
      %26 = dma.hbm_to_vmem [thread:$0]  %s0, 256, %s21, [#allocation3], 128, 128, 8
    $region5: #{tpu_custom_call.1} parent=1 // pred_fallthru
      _
    // Predicated region
    $region6: #{tpu_custom_call.1} parent=1 // pred_check
      _
    $region7: #{tpu_custom_call.1} parent=1 // pred_check_branch
      %28 = sbr.rel (0) target = $region9
    $region8: #{tpu_custom_call.1} parent=1 // pred_region
      %s30 = ssub.s32 4096, 4096
      %31 = vsyncadd [#allocation6], %s30
      %s32 = sshll.u32 [#allocation5], 4
      %s33 = int_to_ptr.vmem [resolvable:$true] %s32
      %38 = dma.hbm_to_vmem [thread:$0]  %s1, 4096, %s33, [#allocation6], 256, 256, 16
    $region9: #{tpu_custom_call.1} parent=1 // pred_fallthru
      _
    // Predicated region
    $region10: #{tpu_custom_call.1} parent=1 // pred_check
      _
    $region11: #{tpu_custom_call.1} parent=1 // pred_check_branch
      %40 = sbr.rel (0) target = $region13
    $region12: #{tpu_custom_call.1} parent=1 // pred_region
      %s42 = ssub.s32 8192, 8192
      %43 = vsyncadd [#allocation6], %s42
      %s44 = sshll.u32 [#allocation7], 4
      %s45 = int_to_ptr.vmem [resolvable:$true] %s44
      %50 = dma.hbm_to_vmem [thread:$0]  %s2, 8192, %s45, [#allocation6], 256, 256, 16
    $region13: #{tpu_custom_call.1} parent=1 // pred_fallthru
      _
    // Predicated region
    $region14: #{tpu_custom_call.1} parent=1 // pred_check
      _
    $region15: #{tpu_custom_call.1} parent=1 // pred_check_branch
      %52 = sbr.rel (0) target = $region17
    $region16: #{tpu_custom_call.1} parent=1 // pred_region
      _
    $region17: #{tpu_custom_call.1} parent=1 // pred_fallthru
      _
    // Predicated region
    $region18: #{tpu_custom_call.1} parent=1 // pred_check
      _
    $region19: #{tpu_custom_call.1} parent=1 // pred_check_branch
      %54 = sbr.rel (0) target = $region21
    $region20: #{tpu_custom_call.1} parent=1 // pred_region
      %s56 = ssub.s32 4096, 4096
      %57 = vsyncadd [#allocation9], %s56
      %s58 = sshll.u32 [#allocation8], 4
      %s59 = int_to_ptr.vmem [resolvable:$true] %s58
      %64 = dma.hbm_to_vmem [thread:$0]  %s4, 4096, %s59, [#allocation9], 128, 128, 8
    $region21: #{tpu_custom_call.1} parent=1 // pred_fallthru
      _
    // Predicated region
    $region22: #{tpu_custom_call.1} parent=1 // pred_check
      _
    $region23: #{tpu_custom_call.1} parent=1 // pred_check_branch
      %66 = sbr.rel (0) target = $region25
    $region24: #{tpu_custom_call.1} parent=1 // pred_region
      _
    $region25: #{tpu_custom_call.1} parent=1 // pred_fallthru
      _
    // Predicated region
    $region26: #{tpu_custom_call.1} parent=1 // pred_check
      _
    $region27: #{tpu_custom_call.1} parent=1 // pred_check_branch
      %68 = sbr.rel (0) target = $region29
    $region28: #{tpu_custom_call.1} parent=1 // pred_region
      %69 = dma.done [#allocation3], 256
    $region29: #{tpu_custom_call.1} parent=1 // pred_fallthru
      _
    // Predicated region
    $region30: #{tpu_custom_call.1} parent=1 // pred_check
      _
    $region31: #{tpu_custom_call.1} parent=1 // pred_check_branch
      %71 = sbr.rel (0) target = $region33
    $region32: #{tpu_custom_call.1} parent=1 // pred_region
      %72 = dma.done [#allocation6], 4096
    $region33: #{tpu_custom_call.1} parent=1 // pred_fallthru
      _
    // Predicated region
    $region34: #{tpu_custom_call.1} parent=1 // pred_check
      _
    $region35: #{tpu_custom_call.1} parent=1 // pred_check_branch
      %74 = sbr.rel (0) target = $region37
    $region36: #{tpu_custom_call.1} parent=1 // pred_region
      %75 = dma.done [#allocation6], 8192
    $region37: #{tpu_custom_call.1} parent=1 // pred_fallthru
      _
    // Predicated region
    $region38: #{tpu_custom_call.1} parent=1 // pred_check
      _
    $region39: #{tpu_custom_call.1} parent=1 // pred_check_branch
      %77 = sbr.rel (0) target = $region41
    $region40: #{tpu_custom_call.1} parent=1 // pred_region
      %78 = dma.done [#allocation9], 4096
    $region41: #{tpu_custom_call.1} parent=1 // pred_fallthru
      _
    %v79 = vld [vmem:[#allocation2] sm:$0xff]
    %v80 = vld [vmem:[#allocation2 + $0x8] sm:$0xff]
    %v81 = vld [vmem:[#allocation5] sm:$0xff]
    %v82 = vld [vmem:[#allocation5 + $0x8] sm:$0xff]
    %v83 = vld [vmem:[#allocation5 + $0x10] sm:$0xff]
    %v84 = vld [vmem:[#allocation5 + $0x18] sm:$0xff]
    %v85 = vld [vmem:[#allocation5 + $0x20] sm:$0xff]
    %v86 = vld [vmem:[#allocation5 + $0x28] sm:$0xff]
    %v87 = vld [vmem:[#allocation5 + $0x30] sm:$0xff]
    %v88 = vld [vmem:[#allocation5 + $0x38] sm:$0xff]
    %v89 = vld [vmem:[#allocation5 + $0x40] sm:$0xff]
    %v90 = vld [vmem:[#allocation5 + $0x48] sm:$0xff]
    %v91 = vld [vmem:[#allocation5 + $0x50] sm:$0xff]
    %v92 = vld [vmem:[#allocation5 + $0x58] sm:$0xff]
    %v93 = vld [vmem:[#allocation5 + $0x60] sm:$0xff]
    %v94 = vld [vmem:[#allocation5 + $0x68] sm:$0xff]
    %v95 = vld [vmem:[#allocation5 + $0x70] sm:$0xff]
    %v96 = vld [vmem:[#allocation5 + $0x78] sm:$0xff]
    %v97 = vld [vmem:[#allocation5 + $0x80] sm:$0xff]
    %v98 = vld [vmem:[#allocation5 + $0x88] sm:$0xff]
    %v99 = vld [vmem:[#allocation5 + $0x90] sm:$0xff]
    %v100 = vld [vmem:[#allocation5 + $0x98] sm:$0xff]
    %v101 = vld [vmem:[#allocation5 + $0xa0] sm:$0xff]
    %v102 = vld [vmem:[#allocation5 + $0xa8] sm:$0xff]
    %v103 = vld [vmem:[#allocation5 + $0xb0] sm:$0xff]
    %v104 = vld [vmem:[#allocation5 + $0xb8] sm:$0xff]
    %v105 = vld [vmem:[#allocation5 + $0xc0] sm:$0xff]
    %v106 = vld [vmem:[#allocation5 + $0xc8] sm:$0xff]
    %v107 = vld [vmem:[#allocation5 + $0xd0] sm:$0xff]
    %v108 = vld [vmem:[#allocation5 + $0xd8] sm:$0xff]
    %v109 = vld [vmem:[#allocation5 + $0xe0] sm:$0xff]
    %v110 = vld [vmem:[#allocation5 + $0xe8] sm:$0xff]
    %v111 = vld [vmem:[#allocation5 + $0xf0] sm:$0xff]
    %v112 = vld [vmem:[#allocation5 + $0xf8] sm:$0xff]
    %113 = vmatprep.subr.mxu0 %v82
    %114 = vmatpush1.msra.mxu0 %v81
    %115 = vmatprep.subr.mxu0 %v84
    %116 = vmatpush1.msra.mxu0 %v83
    %117 = vmatprep.subr.mxu0 %v86
    %118 = vmatpush1.msra.mxu0 %v85
    %119 = vmatprep.subr.mxu0 %v88
    %120 = vmatpush1.msra.mxu0 %v87
    %121 = vmatprep.subr.mxu0 %v90
    %122 = vmatpush1.msra.mxu0 %v89
    %123 = vmatprep.subr.mxu0 %v92
    %124 = vmatpush1.msra.mxu0 %v91
    %125 = vmatprep.subr.mxu0 %v94
    %126 = vmatpush1.msra.mxu0 %v93
    %127 = vmatprep.subr.mxu0 %v96
    %128 = vmatpush1.msra.mxu0 %v95
    %129 = vmatprep.subr.mxu0 %v98
    %130 = vmatpush1.msra.mxu0 %v97
    %131 = vmatprep.subr.mxu0 %v100
    %132 = vmatpush1.msra.mxu0 %v99
    %133 = vmatprep.subr.mxu0 %v102
    %134 = vmatpush1.msra.mxu0 %v101
    %135 = vmatprep.subr.mxu0 %v104
    %136 = vmatpush1.msra.mxu0 %v103
    %137 = vmatprep.subr.mxu0 %v106
    %138 = vmatpush1.msra.mxu0 %v105
    %139 = vmatprep.subr.mxu0 %v108
    %140 = vmatpush1.msra.mxu0 %v107
    %141 = vmatprep.subr.mxu0 %v110
    %142 = vmatpush1.msra.mxu0 %v109
    %143 = vmatprep.subr.mxu0 %v112
    %144 = vmatpush1.msra.mxu0 %v111
    %145 = vmatprep.subr.mxu0 0.0
    %146 = vmatpush1.msra.mxu0 0.0
    %147 = vmatprep.subr.mxu0 0.0
    %148 = vmatpush1.msra.mxu0 0.0
    %149 = vmatprep.subr.mxu0 0.0
    %150 = vmatpush1.msra.mxu0 0.0
    %151 = vmatprep.subr.mxu0 0.0
    %152 = vmatpush1.msra.mxu0 0.0
    %153 = vmatprep.subr.mxu0 0.0
    %154 = vmatpush1.msra.mxu0 0.0
    %155 = vmatprep.subr.mxu0 0.0
    %156 = vmatpush1.msra.mxu0 0.0
    %157 = vmatprep.subr.mxu0 0.0
    %158 = vmatpush1.msra.mxu0 0.0
    %159 = vmatprep.subr.mxu0 0.0
    %160 = vmatpush1.msra.mxu0 0.0
    %161 = vmatprep.subr.mxu0 0.0
    %162 = vmatpush1.msra.mxu0 0.0
    %163 = vmatprep.subr.mxu0 0.0
    %164 = vmatpush1.msra.mxu0 0.0
    %165 = vmatprep.subr.mxu0 0.0
    %166 = vmatpush1.msra.mxu0 0.0
    %167 = vmatprep.subr.mxu0 0.0
    %168 = vmatpush1.msra.mxu0 0.0
    %169 = vmatprep.subr.mxu0 0.0
    %170 = vmatpush1.msra.mxu0 0.0
    %171 = vmatprep.subr.mxu0 0.0
    %172 = vmatpush1.msra.mxu0 0.0
    %173 = vmatprep.subr.mxu0 0.0
    %174 = vmatpush1.msra.mxu0 0.0
    %175 = vmatprep.subr.mxu0 0.0
    %176 = vmatpush1.msra.mxu0 0.0
    %177 = vmatprep.mubr.f32.mxu0 0.0
    %178 = vmatmul.mubr.f32.gmra.mrb[0].mxu0 %v79
    %v179 = vpop.f32.mrb[0].mxu0
    %v180 = vadd.f32 0.0, %v179
    %v181 = vpop.f32.mrb[0].mxu0
    %v182 = vadd.f32 0.0, %v181
    %183 = vmatprep.mubr.f32.mxu0 0.0
    %184 = vmatmul.mubr.f32.gmra.mrb[0].mxu0 %v80
    %v185 = vpop.f32.mrb[0].mxu0
    %v186 = vadd.f32 0.0, %v185
    %v187 = vpop.f32.mrb[0].mxu0
    %v188 = vadd.f32 0.0, %v187
    %189 = vdwg.mxu0
    %v190 = vmul.f32 %v180, 0.5
    %v191 = vmul.f32 %v182, 0.5
    %v192 = vmul.f32 %v186, 0.5
    %v193 = vmul.f32 %v188, 0.5
    %v194 = vmul.f32 %v180, 0.70710677
    %v195 = vmul.f32 %v182, 0.70710677
    %v196 = vmul.f32 %v186, 0.70710677
    %v197 = vmul.f32 %v188, 0.70710677
    %v198 = verf.f32.pop %v194
    %v199 = verf.f32.pop %v195
    %v200 = verf.f32.pop %v196
    %v201 = verf.f32.pop %v197
    %v202 = vadd.f32 %v198, 1.0
    %v203 = vadd.f32 %v199, 1.0
    %v204 = vadd.f32 %v200, 1.0
    %v205 = vadd.f32 %v201, 1.0
    %v206 = vmul.f32 %v190, %v202
    %v207 = vmul.f32 %v191, %v203
    %v208 = vmul.f32 %v192, %v204
    %v209 = vmul.f32 %v193, %v205
    %v210 = vld [vmem:[#allocation7] sm:$0xff]
    %v211 = vld [vmem:[#allocation7 + $0x8] sm:$0xff]
    %v212 = vld [vmem:[#allocation7 + $0x10] sm:$0xff]
    %v213 = vld [vmem:[#allocation7 + $0x18] sm:$0xff]
    %v214 = vld [vmem:[#allocation7 + $0x20] sm:$0xff]
    %v215 = vld [vmem:[#allocation7 + $0x28] sm:$0xff]
    %v216 = vld [vmem:[#allocation7 + $0x30] sm:$0xff]
    %v217 = vld [vmem:[#allocation7 + $0x38] sm:$0xff]
    %v218 = vld [vmem:[#allocation7 + $0x40] sm:$0xff]
    %v219 = vld [vmem:[#allocation7 + $0x48] sm:$0xff]
    %v220 = vld [vmem:[#allocation7 + $0x50] sm:$0xff]
    %v221 = vld [vmem:[#allocation7 + $0x58] sm:$0xff]
    %v222 = vld [vmem:[#allocation7 + $0x60] sm:$0xff]
    %v223 = vld [vmem:[#allocation7 + $0x68] sm:$0xff]
    %v224 = vld [vmem:[#allocation7 + $0x70] sm:$0xff]
    %v225 = vld [vmem:[#allocation7 + $0x78] sm:$0xff]
    %v226 = vld [vmem:[#allocation7 + $0x80] sm:$0xff]
    %v227 = vld [vmem:[#allocation7 + $0x88] sm:$0xff]
    %v228 = vld [vmem:[#allocation7 + $0x90] sm:$0xff]
    %v229 = vld [vmem:[#allocation7 + $0x98] sm:$0xff]
    %v230 = vld [vmem:[#allocation7 + $0xa0] sm:$0xff]
    %v231 = vld [vmem:[#allocation7 + $0xa8] sm:$0xff]
    %v232 = vld [vmem:[#allocation7 + $0xb0] sm:$0xff]
    %v233 = vld [vmem:[#allocation7 + $0xb8] sm:$0xff]
    %v234 = vld [vmem:[#allocation7 + $0xc0] sm:$0xff]
    %v235 = vld [vmem:[#allocation7 + $0xc8] sm:$0xff]
    %v236 = vld [vmem:[#allocation7 + $0xd0] sm:$0xff]
    %v237 = vld [vmem:[#allocation7 + $0xd8] sm:$0xff]
    %v238 = vld [vmem:[#allocation7 + $0xe0] sm:$0xff]
    %v239 = vld [vmem:[#allocation7 + $0xe8] sm:$0xff]
    %v240 = vld [vmem:[#allocation7 + $0xf0] sm:$0xff]
    %v241 = vld [vmem:[#allocation7 + $0xf8] sm:$0xff]
    %v242 = vld [vmem:[#allocation7 + $0x100] sm:$0xff]
    %v243 = vld [vmem:[#allocation7 + $0x108] sm:$0xff]
    %v244 = vld [vmem:[#allocation7 + $0x110] sm:$0xff]
    %v245 = vld [vmem:[#allocation7 + $0x118] sm:$0xff]
    %v246 = vld [vmem:[#allocation7 + $0x120] sm:$0xff]
    %v247 = vld [vmem:[#allocation7 + $0x128] sm:$0xff]
    %v248 = vld [vmem:[#allocation7 + $0x130] sm:$0xff]
    %v249 = vld [vmem:[#allocation7 + $0x138] sm:$0xff]
    %v250 = vld [vmem:[#allocation7 + $0x140] sm:$0xff]
    %v251 = vld [vmem:[#allocation7 + $0x148] sm:$0xff]
    %v252 = vld [vmem:[#allocation7 + $0x150] sm:$0xff]
    %v253 = vld [vmem:[#allocation7 + $0x158] sm:$0xff]
    %v254 = vld [vmem:[#allocation7 + $0x160] sm:$0xff]
    %v255 = vld [vmem:[#allocation7 + $0x168] sm:$0xff]
    %v256 = vld [vmem:[#allocation7 + $0x170] sm:$0xff]
    %v257 = vld [vmem:[#allocation7 + $0x178] sm:$0xff]
    %v258 = vld [vmem:[#allocation7 + $0x180] sm:$0xff]
    %v259 = vld [vmem:[#allocation7 + $0x188] sm:$0xff]
    %v260 = vld [vmem:[#allocation7 + $0x190] sm:$0xff]
    %v261 = vld [vmem:[#allocation7 + $0x198] sm:$0xff]
    %v262 = vld [vmem:[#allocation7 + $0x1a0] sm:$0xff]
    %v263 = vld [vmem:[#allocation7 + $0x1a8] sm:$0xff]
    %v264 = vld [vmem:[#allocation7 + $0x1b0] sm:$0xff]
    %v265 = vld [vmem:[#allocation7 + $0x1b8] sm:$0xff]
    %v266 = vld [vmem:[#allocation7 + $0x1c0] sm:$0xff]
    %v267 = vld [vmem:[#allocation7 + $0x1c8] sm:$0xff]
    %v268 = vld [vmem:[#allocation7 + $0x1d0] sm:$0xff]
    %v269 = vld [vmem:[#allocation7 + $0x1d8] sm:$0xff]
    %v270 = vld [vmem:[#allocation7 + $0x1e0] sm:$0xff]
    %v271 = vld [vmem:[#allocation7 + $0x1e8] sm:$0xff]
    %v272 = vld [vmem:[#allocation7 + $0x1f0] sm:$0xff]
    %v273 = vld [vmem:[#allocation7 + $0x1f8] sm:$0xff]
    %v274 = vld [vmem:[%s3] sm:$0x3]
    %v276 = vlaneseq
    %v277 = vshrl.u32 %v276, 7
    %v278 = vsub.s32 0, %v277
    %v279 = vrot.slane %v274, %v278
    %v280 = vlaneseq
    %v281 = vshrl.u32 %v280, 7
    %v282 = vsub.s32 1, %v281
    %v283 = vrot.slane %v274, %v282
    %286 = vmatprep.subr.mxu0 %v211
    %287 = vmatpush1.msra.mxu0 %v210
    %288 = vmatprep.subr.mxu0 %v213
    %289 = vmatpush1.msra.mxu0 %v212
    %290 = vmatprep.subr.mxu0 %v215
    %291 = vmatpush1.msra.mxu0 %v214
    %292 = vmatprep.subr.mxu0 %v217
    %293 = vmatpush1.msra.mxu0 %v216
    %294 = vmatprep.subr.mxu0 %v219
    %295 = vmatpush1.msra.mxu0 %v218
    %296 = vmatprep.subr.mxu0 %v221
    %297 = vmatpush1.msra.mxu0 %v220
    %298 = vmatprep.subr.mxu0 %v223
    %299 = vmatpush1.msra.mxu0 %v222
    %300 = vmatprep.subr.mxu0 %v225
    %301 = vmatpush1.msra.mxu0 %v224
    %302 = vmatprep.subr.mxu0 %v227
    %303 = vmatpush1.msra.mxu0 %v226
    %304 = vmatprep.subr.mxu0 %v229
    %305 = vmatpush1.msra.mxu0 %v228
    %306 = vmatprep.subr.mxu0 %v231
    %307 = vmatpush1.msra.mxu0 %v230
    %308 = vmatprep.subr.mxu0 %v233
    %309 = vmatpush1.msra.mxu0 %v232
    %310 = vmatprep.subr.mxu0 %v235
    %311 = vmatpush1.msra.mxu0 %v234
    %312 = vmatprep.subr.mxu0 %v237
    %313 = vmatpush1.msra.mxu0 %v236
    %314 = vmatprep.subr.mxu0 %v239
    %315 = vmatpush1.msra.mxu0 %v238
    %316 = vmatprep.subr.mxu0 %v241
    %317 = vmatpush1.msra.mxu0 %v240
    %318 = vmatprep.subr.mxu0 %v243
    %319 = vmatpush1.msra.mxu0 %v242
    %320 = vmatprep.subr.mxu0 %v245
    %321 = vmatpush1.msra.mxu0 %v244
    %322 = vmatprep.subr.mxu0 %v247
    %323 = vmatpush1.msra.mxu0 %v246
    %324 = vmatprep.subr.mxu0 %v249
    %325 = vmatpush1.msra.mxu0 %v248
    %326 = vmatprep.subr.mxu0 %v251
    %327 = vmatpush1.msra.mxu0 %v250
    %328 = vmatprep.subr.mxu0 %v253
    %329 = vmatpush1.msra.mxu0 %v252
    %330 = vmatprep.subr.mxu0 %v255
    %331 = vmatpush1.msra.mxu0 %v254
    %332 = vmatprep.subr.mxu0 %v257
    %333 = vmatpush1.msra.mxu0 %v256
    %334 = vmatprep.subr.mxu0 %v259
    %335 = vmatpush1.msra.mxu0 %v258
    %336 = vmatprep.subr.mxu0 %v261
    %337 = vmatpush1.msra.mxu0 %v260
    %338 = vmatprep.subr.mxu0 %v263
    %339 = vmatpush1.msra.mxu0 %v262
    %340 = vmatprep.subr.mxu0 %v265
    %341 = vmatpush1.msra.mxu0 %v264
    %342 = vmatprep.subr.mxu0 %v267
    %343 = vmatpush1.msra.mxu0 %v266
    %344 = vmatprep.subr.mxu0 %v269
    %345 = vmatpush1.msra.mxu0 %v268
    %346 = vmatprep.subr.mxu0 %v271
    %347 = vmatpush1.msra.mxu0 %v270
    %348 = vmatprep.subr.mxu0 %v273
    %349 = vmatpush1.msra.mxu0 %v272
    %350 = vmatprep.mubr.f32.mxu0 %v207
    %351 = vmatmul.mubr.f32.gmra.mrb[0].mxu0 %v206
    %v352 = vpop.f32.mrb[0].mxu0
    %v353 = vadd.f32 %v279, %v352
    %v354 = vpop.f32.mrb[0].mxu0
    %v355 = vadd.f32 %v283, %v354
    %356 = vmatprep.mubr.f32.mxu0 %v209
    %357 = vmatmul.mubr.f32.gmra.mrb[0].mxu0 %v208
    %v358 = vpop.f32.mrb[0].mxu0
    %v359 = vadd.f32 %v279, %v358
    %v360 = vpop.f32.mrb[0].mxu0
    %v361 = vadd.f32 %v283, %v360
    %362 = vdwg.mxu0
    %v363 = vmul.f32 %v353, 0.5
    %v364 = vmul.f32 %v355, 0.5
    %v365 = vmul.f32 %v359, 0.5
    %v366 = vmul.f32 %v361, 0.5
    %v367 = vmul.f32 %v353, 0.70710677
    %v368 = vmul.f32 %v355, 0.70710677
    %v369 = vmul.f32 %v359, 0.70710677
    %v370 = vmul.f32 %v361, 0.70710677
    %v371 = verf.f32.pop %v367
    %v372 = verf.f32.pop %v368
    %v373 = verf.f32.pop %v369
    %v374 = verf.f32.pop %v370
    %v375 = vadd.f32 %v371, 1.0
    %v376 = vadd.f32 %v372, 1.0
    %v377 = vadd.f32 %v373, 1.0
    %v378 = vadd.f32 %v374, 1.0
    %v379 = vmul.f32 %v363, %v375
    %v380 = vmul.f32 %v364, %v376
    %v381 = vmul.f32 %v365, %v377
    %v382 = vmul.f32 %v366, %v378
    %v383 = vld [vmem:[#allocation8] sm:$0xff]
    %v384 = vld [vmem:[#allocation8 + $0x8] sm:$0xff]
    %v385 = vld [vmem:[#allocation8 + $0x10] sm:$0xff]
    %v386 = vld [vmem:[#allocation8 + $0x18] sm:$0xff]
    %v387 = vld [vmem:[#allocation8 + $0x20] sm:$0xff]
    %v388 = vld [vmem:[#allocation8 + $0x28] sm:$0xff]
    %v389 = vld [vmem:[#allocation8 + $0x30] sm:$0xff]
    %v390 = vld [vmem:[#allocation8 + $0x38] sm:$0xff]
    %v391 = vld [vmem:[#allocation8 + $0x40] sm:$0xff]
    %v392 = vld [vmem:[#allocation8 + $0x48] sm:$0xff]
    %v393 = vld [vmem:[#allocation8 + $0x50] sm:$0xff]
    %v394 = vld [vmem:[#allocation8 + $0x58] sm:$0xff]
    %v395 = vld [vmem:[#allocation8 + $0x60] sm:$0xff]
    %v396 = vld [vmem:[#allocation8 + $0x68] sm:$0xff]
    %v397 = vld [vmem:[#allocation8 + $0x70] sm:$0xff]
    %v398 = vld [vmem:[#allocation8 + $0x78] sm:$0xff]
    %v399 = vld [vmem:[#allocation8 + $0x80] sm:$0xff]
    %v400 = vld [vmem:[#allocation8 + $0x88] sm:$0xff]
    %v401 = vld [vmem:[#allocation8 + $0x90] sm:$0xff]
    %v402 = vld [vmem:[#allocation8 + $0x98] sm:$0xff]
    %v403 = vld [vmem:[#allocation8 + $0xa0] sm:$0xff]
    %v404 = vld [vmem:[#allocation8 + $0xa8] sm:$0xff]
    %v405 = vld [vmem:[#allocation8 + $0xb0] sm:$0xff]
    %v406 = vld [vmem:[#allocation8 + $0xb8] sm:$0xff]
    %v407 = vld [vmem:[#allocation8 + $0xc0] sm:$0xff]
    %v408 = vld [vmem:[#allocation8 + $0xc8] sm:$0xff]
    %v409 = vld [vmem:[#allocation8 + $0xd0] sm:$0xff]
    %v410 = vld [vmem:[#allocation8 + $0xd8] sm:$0xff]
    %v411 = vld [vmem:[#allocation8 + $0xe0] sm:$0xff]
    %v412 = vld [vmem:[#allocation8 + $0xe8] sm:$0xff]
    %v413 = vld [vmem:[#allocation8 + $0xf0] sm:$0xff]
    %v414 = vld [vmem:[#allocation8 + $0xf8] sm:$0xff]
    %v415 = vld [vmem:[%s5] sm:$0x1]
    %v417 = vlaneseq
    %v418 = vshrl.u32 %v417, 7
    %v419 = vsub.s32 0, %v418
    %v420 = vrot.slane %v415, %v419
    %422 = vmatprep.subr.mxu0 0.0
    %423 = vmatpush1.msra.mxu0 %v383
    %424 = vmatprep.subr.mxu0 0.0
    %425 = vmatpush1.msra.mxu0 %v384
    %426 = vmatprep.subr.mxu0 0.0
    %427 = vmatpush1.msra.mxu0 %v385
    %428 = vmatprep.subr.mxu0 0.0
    %429 = vmatpush1.msra.mxu0 %v386
    %430 = vmatprep.subr.mxu0 0.0
    %431 = vmatpush1.msra.mxu0 %v387
    %432 = vmatprep.subr.mxu0 0.0
    %433 = vmatpush1.msra.mxu0 %v388
    %434 = vmatprep.subr.mxu0 0.0
    %435 = vmatpush1.msra.mxu0 %v389
    %436 = vmatprep.subr.mxu0 0.0
    %437 = vmatpush1.msra.mxu0 %v390
    %438 = vmatprep.subr.mxu0 0.0
    %439 = vmatpush1.msra.mxu0 %v391
    %440 = vmatprep.subr.mxu0 0.0
    %441 = vmatpush1.msra.mxu0 %v392
    %442 = vmatprep.subr.mxu0 0.0
    %443 = vmatpush1.msra.mxu0 %v393
    %444 = vmatprep.subr.mxu0 0.0
    %445 = vmatpush1.msra.mxu0 %v394
    %446 = vmatprep.subr.mxu0 0.0
    %447 = vmatpush1.msra.mxu0 %v395
    %448 = vmatprep.subr.mxu0 0.0
    %449 = vmatpush1.msra.mxu0 %v396
    %450 = vmatprep.subr.mxu0 0.0
    %451 = vmatpush1.msra.mxu0 %v397
    %452 = vmatprep.subr.mxu0 0.0
    %453 = vmatpush1.msra.mxu0 %v398
    %454 = vmatprep.subr.mxu0 0.0
    %455 = vmatpush1.msra.mxu0 %v399
    %456 = vmatprep.subr.mxu0 0.0
    %457 = vmatpush1.msra.mxu0 %v400
    %458 = vmatprep.subr.mxu0 0.0
    %459 = vmatpush1.msra.mxu0 %v401
    %460 = vmatprep.subr.mxu0 0.0
    %461 = vmatpush1.msra.mxu0 %v402
    %462 = vmatprep.subr.mxu0 0.0
    %463 = vmatpush1.msra.mxu0 %v403
    %464 = vmatprep.subr.mxu0 0.0
    %465 = vmatpush1.msra.mxu0 %v404
    %466 = vmatprep.subr.mxu0 0.0
    %467 = vmatpush1.msra.mxu0 %v405
    %468 = vmatprep.subr.mxu0 0.0
    %469 = vmatpush1.msra.mxu0 %v406
    %470 = vmatprep.subr.mxu0 0.0
    %471 = vmatpush1.msra.mxu0 %v407
    %472 = vmatprep.subr.mxu0 0.0
    %473 = vmatpush1.msra.mxu0 %v408
    %474 = vmatprep.subr.mxu0 0.0
    %475 = vmatpush1.msra.mxu0 %v409
    %476 = vmatprep.subr.mxu0 0.0
    %477 = vmatpush1.msra.mxu0 %v410
    %478 = vmatprep.subr.mxu0 0.0
    %479 = vmatpush1.msra.mxu0 %v411
    %480 = vmatprep.subr.mxu0 0.0
    %481 = vmatpush1.msra.mxu0 %v412
    %482 = vmatprep.subr.mxu0 0.0
    %483 = vmatpush1.msra.mxu0 %v413
    %484 = vmatprep.subr.mxu0 0.0
    %485 = vmatpush1.msra.mxu0 %v414
    %486 = vmatprep.mubr.f32.mxu0 %v380
    %487 = vmatmul.mubr.f32.gmra.mrb[0].mxu0 %v379
    %v488 = vpop.f32.mrb[0].mxu0
    %v489 = vadd.f32 %v420, %v488
    %v490 = vpop.f32.mrb[0].mxu0
    %491 = vmatprep.mubr.f32.mxu0 %v382
    %492 = vmatmul.mubr.f32.gmra.mrb[0].mxu0 %v381
    %v493 = vpop.f32.mrb[0].mxu0
    %v494 = vadd.f32 %v420, %v493
    %v495 = vpop.f32.mrb[0].mxu0
    %496 = vdwg.mxu0
    %497 = vst [vmem:[#allocation10] sm:$0xff] %v489
    %498 = vst [vmem:[#allocation10 + $0x8] sm:$0xff] %v494
    // Predicated region
    $region42: #{tpu_custom_call.1} parent=1 // pred_check
      _
    $region43: #{tpu_custom_call.1} parent=1 // pred_check_branch
      %500 = sbr.rel (0) target = $region45
    $region44: #{tpu_custom_call.1} parent=1 // pred_region
      %s502 = ssub.s32 256, 256
      %503 = vsyncadd [#allocation4], %s502
      %s504 = sshll.u32 [#allocation10], 4
      %s505 = int_to_ptr.vmem [resolvable:$true] %s504
      %510 = dma.vmem_to_hbm [thread:$0]  %s505, 256, %s6, [#allocation4], 128, 128, 8
    $region45: #{tpu_custom_call.1} parent=1 // pred_fallthru
      _
    // Predicated region
    $region46: #{tpu_custom_call.1} parent=1 // pred_check
      _
    $region47: #{tpu_custom_call.1} parent=1 // pred_check_branch
      %512 = sbr.rel (0) target = $region49
    $region48: #{tpu_custom_call.1} parent=1 // pred_region
      %513 = dma.done [#allocation4], 256
    $region49: #{tpu_custom_call.1} parent=1 // pred_fallthru
      _
    %514 = vsyncpa [#allocation3], 1
    %515 = vsyncpa [#allocation6], 1
    %516 = vsyncpa [#allocation9], 1
    %517 = vsyncpa [#allocation4], 1

</llo_original>
